<compile_context>
chip_gen: v6e
topology: v6e:2x2x1
jax: 0.10.0
libtpu: 0.0.40
codegen_flags: <defaults>
</compile_context>

<pallas_src>
import jax
import jax.numpy as jnp
from jax import lax
from jax.experimental import pallas as pl
from jax.experimental.pallas import tpu as pltpu


def _round_up(x, m):
    return (x + m - 1) // m * m


def ensemble_kernel(x_ref,        # VMEM [tb, tk]    bf16  input tile
                    we_ref,       # VMEM [tk, MEp]   bf16  lane-packed, weight-folded W_emb
                    wc_ref,       # VMEM [MEp, Cp]   f32   row-stacked W_cls
                    g_ref,        # VMEM [MEp, Ep]   f32   group-sum (stacked identity)
                    eb_ref,       # VMEM [1, Ep]     f32   folded emb bias
                    lb_ref,       # VMEM [1, Cp]     f32   folded logit bias
                    logits_ref,   # out  [tb, Cp]    f32
                    emb_ref,      # out  [tb, Ep]    f32
                    pacc_ref):    # scratch [tb, MEp] f32  packed-embedding accumulator
    k = pl.program_id(1)

    @pl.when(k == 0)
    def _():
        pacc_ref[...] = jnp.zeros_like(pacc_ref)

    # one bf16 MXU matmul per K tile computes ALL models' weighted embeddings
    pacc_ref[...] += jnp.dot(x_ref[...], we_ref[...],
                             preferred_element_type=jnp.float32)

    @pl.when(k == pl.num_programs(1) - 1)
    def _():
        packed = pacc_ref[...]                                   # [tb, MEp] f32
        # ens_logits = sum_m (w_m*emb_m) @ W_cls[m] + folded biases
        log_acc = jnp.dot(packed, wc_ref[...],
                          preferred_element_type=jnp.float32) + lb_ref[...]
        # ens_emb = sum over per-model column groups + folded emb bias
        emb_acc = jnp.dot(packed, g_ref[...],
                          preferred_element_type=jnp.float32) + eb_ref[...]
        # F.normalize(e, p=2, dim=1): e / max(||e||, 1e-12) == e * rsqrt(max(ss, 1e-24))
        sumsq = jnp.sum(emb_acc * emb_acc, axis=1, keepdims=True)
        inv_norm = lax.rsqrt(jnp.maximum(sumsq, 1e-24))
        emb_ref[...] = (emb_acc * inv_norm).astype(emb_ref.dtype)
        logits_ref[...] = log_acc.astype(logits_ref.dtype)


def pack_ensemble_params(w_emb, b_emb, w_cls, b_cls, weights, *, tk=512):
    """One-time (inference-static) packing of the ensemble weights.

    w_emb [M, D, E], b_emb [M, 1, E], w_cls [M, E, C], b_cls [M, 1, C],
    weights [M].  Cast to bf16 BEFORE padding; ensemble weights folded into
    W_emb; biases folded out of the hot loop.
    """
    M, D, E = w_emb.shape
    C = w_cls.shape[2]
    ME = M * E
    MEp = _round_up(ME, 128)
    Ep = _round_up(E, 128)
    Cp = _round_up(C, 128)
    tk = min(tk, _round_up(D, 128))          # K tile (multiple of 128)
    Dp = _round_up(D, tk)

    w = weights.astype(jnp.float32)

    # fold ensemble weights into W_emb, pack models along the lane axis: [D, M*E]
    we_w = w_emb.astype(jnp.float32) * w[:, None, None]
    we_packed = jnp.transpose(we_w, (1, 0, 2)).reshape(D, ME).astype(jnp.bfloat16)
    we_packed = jnp.pad(we_packed, ((0, Dp - D), (0, MEp - ME)))

    # row-stacked classifier weights: [M*E, C] (f32; negligible bytes/FLOPs)
    wc_stacked = jnp.pad(w_cls.astype(jnp.float32).reshape(ME, C),
                         ((0, MEp - ME), (0, Cp - C)))

    # group-sum matrix: packed_emb @ G == sum_m w[m]*emb_m   (padded lanes exact zero)
    g = jnp.pad(jnp.tile(jnp.eye(E, dtype=jnp.float32), (M, 1)),
                ((0, MEp - ME), (0, Ep - E)))

    # folded biases (f32):
    #   eb = sum_m w[m] * b_emb[m]
    #   lb = sum_m w[m] * (b_emb[m] @ W_cls[m] + b_cls[m])
    eb = jnp.einsum('m,moe->oe', w, b_emb.astype(jnp.float32))
    lb = jnp.einsum('m,moc->oc', w,
                    jnp.einsum('moe,mec->moc', b_emb.astype(jnp.float32),
                               w_cls.astype(jnp.float32))
                    + b_cls.astype(jnp.float32))
    eb = jnp.pad(eb, ((0, 0), (0, Ep - E)))
    lb = jnp.pad(lb, ((0, 0), (0, Cp - C)))

    return dict(we=we_packed, wc=wc_stacked, g=g, eb=eb, lb=lb,
                dims=dict(D=D, Dp=Dp, E=E, Ep=Ep, C=C, Cp=Cp, MEp=MEp, tk=tk))


def ensemble_forward(x_nchw, params):
    """Weighted-average ensemble forward with pre-packed weights.

    x_nchw : [B, C, H, W] f32
    returns (ensemble_logits [B, C], ensemble_embedding [B, E])
    """
    d = params["dims"]
    D, Dp, E, Ep, C, Cp, MEp, tk = (d[k] for k in
                                    ("D", "Dp", "E", "Ep", "C", "Cp", "MEp", "tk"))
    B = x_nchw.shape[0]

    # batch padded to 16 (bf16 packs 16 rows per sublane tile)
    Bp = _round_up(max(B, 16), 16)
    tb = Bp if Bp <= 128 else 128
    Bp = _round_up(Bp, tb)

    x_flat = x_nchw.reshape(B, -1).astype(jnp.bfloat16)   # NCHW flatten (PyTorch order)
    assert x_flat.shape[1] == D
    x_pad = jnp.pad(x_flat, ((0, Bp - B), (0, Dp - D)))

    n_b = Bp // tb
    n_k = Dp // tk

    grid_spec = pltpu.PrefetchScalarGridSpec(
        num_scalar_prefetch=0,
        grid=(n_b, n_k),
        in_specs=[
            pl.BlockSpec((tb, tk), lambda b, k: (b, k)),      # x tile
            pl.BlockSpec((tk, MEp), lambda b, k: (k, 0)),     # packed W_emb K-tile
            pl.BlockSpec((MEp, Cp), lambda b, k: (0, 0)),     # stacked W_cls (resident)
            pl.BlockSpec((MEp, Ep), lambda b, k: (0, 0)),     # group-sum matrix
            pl.BlockSpec((1, Ep), lambda b, k: (0, 0)),       # folded emb bias
            pl.BlockSpec((1, Cp), lambda b, k: (0, 0)),       # folded logit bias
        ],
        out_specs=[
            pl.BlockSpec((tb, Cp), lambda b, k: (b, 0)),      # ensemble logits
            pl.BlockSpec((tb, Ep), lambda b, k: (b, 0)),      # ensemble embedding
        ],
        scratch_shapes=[pltpu.VMEM((tb, MEp), jnp.float32)],
    )

    logits_pad, emb_pad = pl.pallas_call(
        ensemble_kernel,
        out_shape=(
            jax.ShapeDtypeStruct((Bp, Cp), jnp.float32),
            jax.ShapeDtypeStruct((Bp, Ep), jnp.float32),
        ),
        grid_spec=grid_spec,
        compiler_params=pltpu.CompilerParams(
            dimension_semantics=("parallel", "arbitrary"),
            vmem_limit_bytes=32 * 1024 * 1024,
        ),
    )(x_pad, params["we"], params["wc"], params["g"], params["eb"], params["lb"])

    return logits_pad[:B, :C], emb_pad[:B, :E]


def reference_forward(x_nchw, w_emb, b_emb, w_cls, b_cls, weights):
    """Pure-JAX f32 reference mirroring the PyTorch EnsembleModel semantics."""
    B = x_nchw.shape[0]
    x_flat = x_nchw.reshape(B, -1)
    embs = jnp.einsum('bd,mde->mbe', x_flat, w_emb) + b_emb          # [M, B, E]
    logits = jnp.einsum('mbe,mec->mbc', embs, w_cls) + b_cls         # [M, B, C]
    w = weights.reshape(-1, 1, 1)
    ens_emb = jnp.sum(embs * w, axis=0)
    ens_log = jnp.sum(logits * w, axis=0)
    norm = jnp.sqrt(jnp.sum(ens_emb * ens_emb, axis=1, keepdims=True))
    ens_emb = ens_emb / jnp.maximum(norm, 1e-12)
    return ens_log, ens_emb


if __name__ == "__main__":
    # Small shapes consistent with the module's forward
    B, C_in, H, W = 2, 4, 16, 16            # NCHW input
    M = 3                                   # number of ensemble members
    E = 32                                  # embedding_dim (small)
    NUM_CLASSES = 64                        # num_classes (small)
    D = C_in * H * W                        # flattened feature dim = 1024

    key = jax.random.PRNGKey(0)
    k_x, k_we, k_be, k_wc, k_bc = jax.random.split(key, 5)

    x = jax.random.normal(k_x, (B, C_in, H, W), dtype=jnp.float32)
    w_emb = jax.random.normal(k_we, (M, D, E), dtype=jnp.float32) * 0.02
    b_emb = jax.random.normal(k_be, (M, 1, E), dtype=jnp.float32) * 0.01
    w_cls = jax.random.normal(k_wc, (M, E, NUM_CLASSES), dtype=jnp.float32) * 0.05
    b_cls = jax.random.normal(k_bc, (M, 1, NUM_CLASSES), dtype=jnp.float32) * 0.01

    # weighted_average with default weights = 1/M (as in __init__ when weights=None)
    ens_weights = jnp.full((M,), 1.0 / M, dtype=jnp.float32)

    # one-time weight packing (static for inference), then the hot forward
    packed = jax.tree_util.tree_map(jax.block_until_ready,
                                    pack_ensemble_params(w_emb, b_emb, w_cls, b_cls,
                                                         ens_weights, tk=512))
    logits, emb = ensemble_forward(x, packed)
    jax.block_until_ready((logits, emb))

    ref_logits, ref_emb = reference_forward(x, w_emb, b_emb, w_cls, b_cls, ens_weights)

    # bf16 x / W_emb with f32 accumulation; classifier path stays f32 ->
    # tolerance covers the bf16 rounding of the first matmul only.
    assert logits.shape == (B, NUM_CLASSES) and emb.shape == (B, E)
    assert jnp.allclose(logits, ref_logits, atol=2e-2, rtol=2e-2), (
        float(jnp.max(jnp.abs(logits - ref_logits))))
    assert jnp.allclose(emb, ref_emb, atol=2e-2, rtol=2e-2), (
        float(jnp.max(jnp.abs(emb - ref_emb))))

    print("KERNEL_OK")
</pallas_src>

<mosaic_0001>
module attributes {stable_mosaic.version = 11 : i64} {
  func.func @ensemble_kernel(%arg0: i32, %arg1: i32, %arg2: memref<16x512xbf16, #tpu.memory_space<vmem>>, %arg3: memref<512x128xbf16, #tpu.memory_space<vmem>>, %arg4: memref<128x128xf32, #tpu.memory_space<vmem>>, %arg5: memref<128x128xf32, #tpu.memory_space<vmem>>, %arg6: memref<1x128xf32, #tpu.memory_space<vmem>>, %arg7: memref<1x128xf32, #tpu.memory_space<vmem>>, %arg8: memref<16x128xf32, #tpu.memory_space<vmem>>, %arg9: memref<16x128xf32, #tpu.memory_space<vmem>>, %arg10: memref<16x128xf32, #tpu.memory_space<vmem>>) attributes {dimension_semantics = [#tpu.dimension_semantics<parallel>, #tpu.dimension_semantics<arbitrary>], iteration_bounds = array<i64: 1, 2>, scalar_prefetch = 0 : i64, scratch_operands = 1 : i64, tpu.core_type = #tpu.core_type<tc>, window_params = [{transform_indices = @transform_0, window_bounds = array<i64: 16, 512>}, {transform_indices = @transform_1, window_bounds = array<i64: 512, 128>}, {pipeline_mode = #tpu.pipeline_mode<synchronous>, transform_indices = @transform_2, window_bounds = array<i64: 128, 128>}, {pipeline_mode = #tpu.pipeline_mode<synchronous>, transform_indices = @transform_3, window_bounds = array<i64: 128, 128>}, {pipeline_mode = #tpu.pipeline_mode<synchronous>, transform_indices = @transform_4, window_bounds = array<i64: 1, 128>}, {pipeline_mode = #tpu.pipeline_mode<synchronous>, transform_indices = @transform_5, window_bounds = array<i64: 1, 128>}, {transform_indices = @transform_6, window_bounds = array<i64: 16, 128>}, {transform_indices = @transform_7, window_bounds = array<i64: 16, 128>}]} {
    %c0_i32 = arith.constant 0 : i32
    %0 = arith.cmpi eq, %arg1, %c0_i32 : i32
    %1 = arith.extui %0 : i1 to i32
    %c0_i32_0 = arith.constant 0 : i32
    %2 = arith.cmpi ne, %1, %c0_i32_0 : i32
    scf.if %2 {
      %cst_9 = arith.constant 0.000000e+00 : f32
      %12 = vector.broadcast %cst_9 : f32 to vector<16x128xf32>
      %c0_10 = arith.constant 0 : index
      %c0_11 = arith.constant 0 : index
      %13 = vector.load %arg10[%c0_10, %c0_11] : memref<16x128xf32, #tpu.memory_space<vmem>>, vector<16x128xf32>
      tpu.vector_store %arg10[%c0_10, %c0_11], %12 {strides = array<i32>} : memref<16x128xf32, #tpu.memory_space<vmem>>, vector<16x128xf32>,
    } else {
    }
    %c0 = arith.constant 0 : index
    %c0_1 = arith.constant 0 : index
    %3 = vector.load %arg10[%c0, %c0_1] : memref<16x128xf32, #tpu.memory_space<vmem>>, vector<16x128xf32>
    %c0_2 = arith.constant 0 : index
    %c0_3 = arith.constant 0 : index
    %4 = vector.load %arg2[%c0_2, %c0_3] : memref<16x512xbf16, #tpu.memory_space<vmem>>, vector<16x512xbf16>
    %c0_4 = arith.constant 0 : index
    %c0_5 = arith.constant 0 : index
    %5 = vector.load %arg3[%c0_4, %c0_5] : memref<512x128xbf16, #tpu.memory_space<vmem>>, vector<512x128xbf16>
    %cst = arith.constant dense<0.000000e+00> : vector<16x128xf32>
    %6 = tpu.matmul %4, %5, %cst {dimension_numbers = #tpu.dot_dimension_numbers<[1], [0], [0], [1], [0, 0, 1, 1], [], []>} : vector<16x512xbf16>, vector<512x128xbf16>, vector<16x128xf32> -> vector<16x128xf32>
    %7 = arith.addf %3, %6 : vector<16x128xf32>
    %c0_6 = arith.constant 0 : index
    %c0_7 = arith.constant 0 : index
    %8 = vector.load %arg10[%c0_6, %c0_7] : memref<16x128xf32, #tpu.memory_space<vmem>>, vector<16x128xf32>
    tpu.vector_store %arg10[%c0_6, %c0_7], %7 {strides = array<i32>} : memref<16x128xf32, #tpu.memory_space<vmem>>, vector<16x128xf32>,
    %c1_i32 = arith.constant 1 : i32
    %9 = arith.cmpi eq, %arg1, %c1_i32 : i32
    %10 = arith.extui %9 : i1 to i32
    %c0_i32_8 = arith.constant 0 : i32
    %11 = arith.cmpi ne, %10, %c0_i32_8 : i32
    scf.if %11 {
      %c0_9 = arith.constant 0 : index
      %c0_10 = arith.constant 0 : index
      %12 = vector.load %arg10[%c0_9, %c0_10] : memref<16x128xf32, #tpu.memory_space<vmem>>, vector<16x128xf32>
      %c0_11 = arith.constant 0 : index
      %c0_12 = arith.constant 0 : index
      %13 = vector.load %arg4[%c0_11, %c0_12] : memref<128x128xf32, #tpu.memory_space<vmem>>, vector<128x128xf32>
      %cst_13 = arith.constant dense<0.000000e+00> : vector<16x128xf32>
      %14 = tpu.matmul %12, %13, %cst_13 {dimension_numbers = #tpu.dot_dimension_numbers<[1], [0], [0], [1], [0, 0, 1, 1], [], []>} : vector<16x128xf32>, vector<128x128xf32>, vector<16x128xf32> -> vector<16x128xf32>
      %c0_14 = arith.constant 0 : index
      %c0_15 = arith.constant 0 : index
      %15 = vector.load %arg7[%c0_14, %c0_15] : memref<1x128xf32, #tpu.memory_space<vmem>>, vector<1x128xf32>
      %16 = vector.broadcast %15 : vector<1x128xf32> to vector<16x128xf32>
      %17 = arith.addf %14, %16 : vector<16x128xf32>
      %c0_16 = arith.constant 0 : index
      %c0_17 = arith.constant 0 : index
      %18 = vector.load %arg5[%c0_16, %c0_17] : memref<128x128xf32, #tpu.memory_space<vmem>>, vector<128x128xf32>
      %cst_18 = arith.constant dense<0.000000e+00> : vector<16x128xf32>
      %19 = tpu.matmul %12, %18, %cst_18 {dimension_numbers = #tpu.dot_dimension_numbers<[1], [0], [0], [1], [0, 0, 1, 1], [], []>} : vector<16x128xf32>, vector<128x128xf32>, vector<16x128xf32> -> vector<16x128xf32>
      %c0_19 = arith.constant 0 : index
      %c0_20 = arith.constant 0 : index
      %20 = vector.load %arg6[%c0_19, %c0_20] : memref<1x128xf32, #tpu.memory_space<vmem>>, vector<1x128xf32>
      %21 = vector.broadcast %20 : vector<1x128xf32> to vector<16x128xf32>
      %22 = arith.addf %19, %21 : vector<16x128xf32>
      %23 = arith.mulf %22, %22 : vector<16x128xf32>
      %cst_21 = arith.constant dense<0.000000e+00> : vector<16xf32>
      %24 = vector.multi_reduction <add>, %23, %cst_21 [1] : vector<16x128xf32> to vector<16xf32>
      %25 = vector.shape_cast %24 : vector<16xf32> to vector<16x1xf32>
      %cst_22 = arith.constant 1.000000e-24 : f32
      %26 = vector.broadcast %cst_22 : f32 to vector<16x1xf32>
      %27 = arith.maximumf %25, %26 : vector<16x1xf32>
      %28 = math.rsqrt %27 : vector<16x1xf32>
      %29 = vector.broadcast %28 : vector<16x1xf32> to vector<16x128xf32>
      %30 = arith.mulf %22, %29 : vector<16x128xf32>
      %c0_23 = arith.constant 0 : index
      %c0_24 = arith.constant 0 : index
      %31 = vector.load %arg9[%c0_23, %c0_24] : memref<16x128xf32, #tpu.memory_space<vmem>>, vector<16x128xf32>
      tpu.vector_store %arg9[%c0_23, %c0_24], %30 {strides = array<i32>} : memref<16x128xf32, #tpu.memory_space<vmem>>, vector<16x128xf32>,
      %c0_25 = arith.constant 0 : index
      %c0_26 = arith.constant 0 : index
      %32 = vector.load %arg8[%c0_25, %c0_26] : memref<16x128xf32, #tpu.memory_space<vmem>>, vector<16x128xf32>
      tpu.vector_store %arg8[%c0_25, %c0_26], %17 {strides = array<i32>} : memref<16x128xf32, #tpu.memory_space<vmem>>, vector<16x128xf32>,
    } else {
    }
    return
  }
  func.func @transform_0(%arg0: i32, %arg1: i32) -> (i32, i32) {
    %c0_i32 = arith.constant 0 : i32
    return %arg0, %arg1 : i32, i32
  }
  func.func @transform_1(%arg0: i32, %arg1: i32) -> (i32, i32) {
    %c0_i32 = arith.constant 0 : i32
    %c0_i32_0 = arith.constant 0 : i32
    return %arg1, %c0_i32 : i32, i32
  }
  func.func @transform_2(%arg0: i32, %arg1: i32) -> (i32, i32) {
    %c0_i32 = arith.constant 0 : i32
    %c0_i32_0 = arith.constant 0 : i32
    %c0_i32_1 = arith.constant 0 : i32
    return %c0_i32, %c0_i32_0 : i32, i32
  }
  func.func @transform_3(%arg0: i32, %arg1: i32) -> (i32, i32) {
    %c0_i32 = arith.constant 0 : i32
    %c0_i32_0 = arith.constant 0 : i32
    %c0_i32_1 = arith.constant 0 : i32
    return %c0_i32, %c0_i32_0 : i32, i32
  }
  func.func @transform_4(%arg0: i32, %arg1: i32) -> (i32, i32) {
    %c0_i32 = arith.constant 0 : i32
    %c0_i32_0 = arith.constant 0 : i32
    %c0_i32_1 = arith.constant 0 : i32
    return %c0_i32, %c0_i32_0 : i32, i32
  }
  func.func @transform_5(%arg0: i32, %arg1: i32) -> (i32, i32) {
    %c0_i32 = arith.constant 0 : i32
    %c0_i32_0 = arith.constant 0 : i32
    %c0_i32_1 = arith.constant 0 : i32
    return %c0_i32, %c0_i32_0 : i32, i32
  }
  func.func @transform_6(%arg0: i32, %arg1: i32) -> (i32, i32) {
    %c0_i32 = arith.constant 0 : i32
    %c0_i32_0 = arith.constant 0 : i32
    return %arg0, %c0_i32 : i32, i32
  }
  func.func @transform_7(%arg0: i32, %arg1: i32) -> (i32, i32) {
    %c0_i32 = arith.constant 0 : i32
    %c0_i32_0 = arith.constant 0 : i32
    return %arg0, %c0_i32 : i32, i32
  }
}

</mosaic_0001>

<llo_original>
// kernel: tpu_custom_call.1
$region0: #{tpu_custom_call.1}
  #allocation0 [shape = 'u32[]', space=smem, size = 0x4, offset = 0x4, fixed_abs, tag = 'smem constant byte address 0x4 - core index']
  #allocation1 [shape = 'u32[144,128]{1,0:T(1,128)}', space=vmem, size = 0x12000, scoped, tag = 'internal scratch']
  #allocation2 [shape = 'f32[16,128]{1,0:T(8,128)}', space=vmem, size = 0x2000, scoped, tag = 'scratch operand']
  %s0 = inlined_call_operand.hbm [shape: bf16[16,1024], index: 0, kind: input, shape index: {}]
  %s1 = inlined_call_operand.hbm [shape: bf16[1024,128], index: 1, kind: input, shape index: {}]
  %s2 = inlined_call_operand.hbm [shape: f32[128,128], index: 2, kind: input, shape index: {}]
  %s3 = inlined_call_operand.hbm [shape: f32[128,128], index: 3, kind: input, shape index: {}]
  %s4 = inlined_call_operand.vmem [shape: f32[1,128], index: 4, kind: input, shape index: {}]
  %s5 = inlined_call_operand.vmem [shape: f32[1,128], index: 5, kind: input, shape index: {}]
  %s6 = inlined_call_operand.hbm [shape: f32[16,128], index: 6, kind: output, shape index: {0}]
  %s7 = inlined_call_operand.hbm [shape: f32[16,128], index: 7, kind: output, shape index: {1}]
  %8 = xla_tuple %s6, %s7
  %s9 = sld [smem:[#allocation0]]
  $region89: #{tpu_custom_call.1} parent=0
    _
  %s11 = ssub.s32 1, %s9
  %s12 = scalar_select 0, %s11, %s9
  $region1: #{tpu_custom_call.1} parent=0
    #allocation3 [shape = 'u8[32768]{0}', space=vmem, size = 0x8000, scoped, tag = 'input window, operand 0']
    #allocation4 [shape = 's32[2]{0}', space=sflag, size = 0x8, scoped, tag = 'scoped memory for tpu_custom_call.1']
    #allocation5 [shape = 's32[2]{0}', space=sflag, size = 0x8, scoped, tag = 'scoped memory for tpu_custom_call.1']
    #allocation6 [shape = 'u8[262144]{0}', space=vmem, size = 0x40000, scoped, tag = 'input window, operand 1']
    #allocation7 [shape = 's32[2]{0}', space=sflag, size = 0x8, scoped, tag = 'scoped memory for tpu_custom_call.1']
    #allocation8 [shape = 'u8[65536]{0}', space=vmem, size = 0x10000, scoped, tag = 'input window, operand 2, single buffered']
    #allocation9 [shape = 'u8[65536]{0}', space=vmem, size = 0x10000, scoped, tag = 'input window, operand 3, single buffered']
    #allocation10 [shape = 's32[1]{0}', space=sflag, size = 0x4, scoped, tag = 'scoped memory for tpu_custom_call.1']
    #allocation11 [shape = 'u8[8192]{0}', space=vmem, size = 0x2000, scoped, tag = 'output window, operand 0, single buffered']
    #allocation12 [shape = 'u8[8192]{0}', space=vmem, size = 0x2000, scoped, tag = 'output window, operand 1, single buffered']
    #allocation13 [shape = 's32[1]{0}', space=sflag, size = 0x4, scoped, tag = 'scoped memory for tpu_custom_call.1']
    %13 = vsyncpa [#allocation4], 0
    %s14 = scalar_lea.sflag [#allocation4], 1
    %15 = vsyncpa %s14, 0
    %16 = vsyncpa [#allocation7], 0
    %s17 = scalar_lea.sflag [#allocation7], 1
    %18 = vsyncpa %s17, 0
    %19 = vsyncpa [#allocation10], 0
    %20 = vsyncpa [#allocation5], 0
    %21 = vsyncpa [#allocation13], 0
    loop: start=0, step=1, limit=4
    $region2: #{tpu_custom_call.1} parent=1 // loop_pre_header
      _
    $region3: #{tpu_custom_call.1} parent=1 // loop_header
      %s23 = sphi 0, %s27
      %p24 = scmp.ge.s32.totalorder %s23, 4
      %s30 = sphi 0, %s42
      %s31 = sphi 0, %s38
      %s32 = sphi 0, %s30
      %s33 = sphi 0, %s31
      %s34 = sphi 0, %s32
      %s35 = sphi 0, %s33
      %s47 = sphi 0, %s49
      %s50 = sphi 0, %s47
      %s51 = sphi 0, %s50
      %s67 = sphi 0, %s51
      %s73 = sphi 0, %s75
      %s76 = sphi 0, %s73
      %s77 = sphi 0, %s76
      %s93 = sphi 0, %s77
      %s97 = sphi 0, %s97
      %s99 = sphi 0, %s97
      %s100 = sphi 0, %s99
      %s114 = sphi 0, %s100
      %s118 = sphi 0, %s118
      %s120 = sphi 0, %s118
      %s121 = sphi 0, %s120
      %s135 = sphi 0, %s121
      %s139 = sphi 0, %s139
      %s141 = sphi 0, %s139
      %s142 = sphi 0, %s141
      %s156 = sphi 0, %s142
      %s160 = sphi 0, %s160
      %s162 = sphi 0, %s160
      %s163 = sphi 0, %s162
      %s177 = sphi 0, %s163
      %s183 = sphi 0, %s185
      %s186 = sphi 0, %s183
      %s187 = sphi 0, %s186
      %s203 = sphi 0, %s187
      %s209 = sphi 0, %s211
      %s212 = sphi 0, %s209
      %s213 = sphi 0, %s212
      %s229 = sphi 0, %s213
    $region4: #{tpu_custom_call.1} parent=1 // loop_header_branch
      %26 = sbr.rel (%p24) target = $region8
    $region5: #{tpu_custom_call.1} parent=1 // loop_body
      %s28 = ssub.s32 %s23, 1
      %s29 = ssub.s32 %s23, 2
      %s36 = sadd.s32 1, %s31
      %p37 = scmp.ge.s32.totalorder %s36, 2
      %s38 = scalar_select %p37, 0, %s36
      %s39 = sadd.s32 1, %s30
      %s40 = scalar_select %p37, %s39, %s30
      %p41 = scmp.ge.s32.totalorder %s40, 1
      %s42 = scalar_select %p41, 0, %s40
      %s43 = ssub.s32 %s30, %s42
      %s44 = ssub.s32 %s31, %s38
      %s45 = sor.u32 %s43, %s44
      %p46 = scmp.eq.s32.totalorder %s45, 0
      %s48 = sadd.s32 %s47, 1
      %s49 = scalar_select %p46, %s47, %s48
      %p52 = pneg %p46
      %p53 = scmp.eq.s32.totalorder %s23, 1
      %p54 = por %p52, %p53
      %p55 = scmp.ne.s32.totalorder %s47, %s50
      %p56 = scmp.eq.s32.totalorder %s23, 0
      %p57 = por %p55, %p56
      %p58 = scmp.ne.s32.totalorder %s47, %s50
      %p59 = scmp.eq.s32.totalorder %s28, 1
      %p60 = por %p58, %p59
      %p61 = scmp.ne.s32.totalorder %s50, %s51
      %p62 = scmp.eq.s32.totalorder %s28, 0
      %p63 = por %p61, %p62
      %p64 = scmp.ne.s32.totalorder %s50, %s51
      %p65 = scmp.eq.s32.totalorder %s29, 1
      %p66 = por %p64, %p65
      %p68 = scmp.ne.s32.totalorder %s51, %s67
      %p69 = scmp.eq.s32.totalorder %s29, 0
      %p70 = por %p68, %p69
      %s71 = ssub.s32 %s31, %s38
      %p72 = scmp.eq.s32.totalorder %s71, 0
      %s74 = sadd.s32 %s73, 1
      %s75 = scalar_select %p72, %s73, %s74
      %p78 = pneg %p72
      %p79 = scmp.eq.s32.totalorder %s23, 1
      %p80 = por %p78, %p79
      %p81 = scmp.ne.s32.totalorder %s73, %s76
      %p82 = scmp.eq.s32.totalorder %s23, 0
      %p83 = por %p81, %p82
      %p84 = scmp.ne.s32.totalorder %s73, %s76
      %p85 = scmp.eq.s32.totalorder %s28, 1
      %p86 = por %p84, %p85
      %p87 = scmp.ne.s32.totalorder %s76, %s77
      %p88 = scmp.eq.s32.totalorder %s28, 0
      %p89 = por %p87, %p88
      %p90 = scmp.ne.s32.totalorder %s76, %s77
      %p91 = scmp.eq.s32.totalorder %s29, 1
      %p92 = por %p90, %p91
      %p94 = scmp.ne.s32.totalorder %s77, %s93
      %p95 = scmp.eq.s32.totalorder %s29, 0
      %p96 = por %p94, %p95
      %s98 = sadd.s32 %s97, 1
      %p101 = scmp.eq.s32.totalorder %s23, 1
      %p102 = scmp.ne.s32.totalorder %s97, %s99
      %p103 = scmp.eq.s32.totalorder %s23, 0
      %p104 = por %p102, %p103
      %p105 = scmp.ne.s32.totalorder %s97, %s99
      %p106 = scmp.eq.s32.totalorder %s28, 1
      %p107 = por %p105, %p106
      %p108 = scmp.ne.s32.totalorder %s99, %s100
      %p109 = scmp.eq.s32.totalorder %s28, 0
      %p110 = por %p108, %p109
      %p111 = scmp.ne.s32.totalorder %s99, %s100
      %p112 = scmp.eq.s32.totalorder %s29, 1
      %p113 = por %p111, %p112
      %p115 = scmp.ne.s32.totalorder %s100, %s114
      %p116 = scmp.eq.s32.totalorder %s29, 0
      %p117 = por %p115, %p116
      %s119 = sadd.s32 %s118, 1
      %p122 = scmp.eq.s32.totalorder %s23, 1
      %p123 = scmp.ne.s32.totalorder %s118, %s120
      %p124 = scmp.eq.s32.totalorder %s23, 0
      %p125 = por %p123, %p124
      %p126 = scmp.ne.s32.totalorder %s118, %s120
      %p127 = scmp.eq.s32.totalorder %s28, 1
      %p128 = por %p126, %p127
      %p129 = scmp.ne.s32.totalorder %s120, %s121
      %p130 = scmp.eq.s32.totalorder %s28, 0
      %p131 = por %p129, %p130
      %p132 = scmp.ne.s32.totalorder %s120, %s121
      %p133 = scmp.eq.s32.totalorder %s29, 1
      %p134 = por %p132, %p133
      %p136 = scmp.ne.s32.totalorder %s121, %s135
      %p137 = scmp.eq.s32.totalorder %s29, 0
      %p138 = por %p136, %p137
      %s140 = sadd.s32 %s139, 1
      %p143 = scmp.eq.s32.totalorder %s23, 1
      %p144 = scmp.ne.s32.totalorder %s139, %s141
      %p145 = scmp.eq.s32.totalorder %s23, 0
      %p146 = por %p144, %p145
      %p147 = scmp.ne.s32.totalorder %s139, %s141
      %p148 = scmp.eq.s32.totalorder %s28, 1
      %p149 = por %p147, %p148
      %p150 = scmp.ne.s32.totalorder %s141, %s142
      %p151 = scmp.eq.s32.totalorder %s28, 0
      %p152 = por %p150, %p151
      %p153 = scmp.ne.s32.totalorder %s141, %s142
      %p154 = scmp.eq.s32.totalorder %s29, 1
      %p155 = por %p153, %p154
      %p157 = scmp.ne.s32.totalorder %s142, %s156
      %p158 = scmp.eq.s32.totalorder %s29, 0
      %p159 = por %p157, %p158
      %s161 = sadd.s32 %s160, 1
      %p164 = scmp.eq.s32.totalorder %s23, 1
      %p165 = scmp.ne.s32.totalorder %s160, %s162
      %p166 = scmp.eq.s32.totalorder %s23, 0
      %p167 = por %p165, %p166
      %p168 = scmp.ne.s32.totalorder %s160, %s162
      %p169 = scmp.eq.s32.totalorder %s28, 1
      %p170 = por %p168, %p169
      %p171 = scmp.ne.s32.totalorder %s162, %s163
      %p172 = scmp.eq.s32.totalorder %s28, 0
      %p173 = por %p171, %p172
      %p174 = scmp.ne.s32.totalorder %s162, %s163
      %p175 = scmp.eq.s32.totalorder %s29, 1
      %p176 = por %p174, %p175
      %p178 = scmp.ne.s32.totalorder %s163, %s177
      %p179 = scmp.eq.s32.totalorder %s29, 0
      %p180 = por %p178, %p179
      %s181 = ssub.s32 %s30, %s42
      %p182 = scmp.eq.s32.totalorder %s181, 0
      %s184 = sadd.s32 %s183, 1
      %s185 = scalar_select %p182, %s183, %s184
      %p188 = pneg %p182
      %p189 = scmp.eq.s32.totalorder %s23, 1
      %p190 = por %p188, %p189
      %p191 = scmp.ne.s32.totalorder %s183, %s186
      %p192 = scmp.eq.s32.totalorder %s23, 0
      %p193 = por %p191, %p192
      %p194 = scmp.ne.s32.totalorder %s183, %s186
      %p195 = scmp.eq.s32.totalorder %s28, 1
      %p196 = por %p194, %p195
      %p197 = scmp.ne.s32.totalorder %s186, %s187
      %p198 = scmp.eq.s32.totalorder %s28, 0
      %p199 = por %p197, %p198
      %p200 = scmp.ne.s32.totalorder %s186, %s187
      %p201 = scmp.eq.s32.totalorder %s29, 1
      %p202 = por %p200, %p201
      %p204 = scmp.ne.s32.totalorder %s187, %s203
      %p205 = scmp.eq.s32.totalorder %s29, 0
      %p206 = por %p204, %p205
      %s207 = ssub.s32 %s30, %s42
      %p208 = scmp.eq.s32.totalorder %s207, 0
      %s210 = sadd.s32 %s209, 1
      %s211 = scalar_select %p208, %s209, %s210
      %p214 = pneg %p208
      %p215 = scmp.eq.s32.totalorder %s23, 1
      %p216 = por %p214, %p215
      %p217 = scmp.ne.s32.totalorder %s209, %s212
      %p218 = scmp.eq.s32.totalorder %s23, 0
      %p219 = por %p217, %p218
      %p220 = scmp.ne.s32.totalorder %s209, %s212
      %p221 = scmp.eq.s32.totalorder %s28, 1
      %p222 = por %p220, %p221
      %p223 = scmp.ne.s32.totalorder %s212, %s213
      %p224 = scmp.eq.s32.totalorder %s28, 0
      %p225 = por %p223, %p224
      %p226 = scmp.ne.s32.totalorder %s212, %s213
      %p227 = scmp.eq.s32.totalorder %s29, 1
      %p228 = por %p226, %p227
      %p230 = scmp.ne.s32.totalorder %s213, %s229
      %p231 = scmp.eq.s32.totalorder %s29, 0
      %p232 = por %p230, %p231
      %p233 = scmp.le.s32.totalorder 1, %s23
      %p234 = scmp.lt.s32.totalorder %s23, 3
      %p235 = pnand %p233, %p234
      %p236 = pneg %p235
      // Predicated region
      $region9: #{tpu_custom_call.1} parent=5 // pred_check
        _
      $region10: #{tpu_custom_call.1} parent=5 // pred_check_branch
        %238 = sbr.rel (%p235) target = $region12
      $region11: #{tpu_custom_call.1} parent=5 // pred_region
        %s239 = ssub.s32 %s23, 1
        // Predicated region
        $region13: #{tpu_custom_call.1} parent=11 // pred_check
          %p240 = pneg %p110
        $region14: #{tpu_custom_call.1} parent=11 // pred_check_branch
          %242 = sbr.rel (%p240) target = $region16
        $region15: #{tpu_custom_call.1} parent=11 // pred_region
          %s244 = ssub.s32 2048, 2048
          %245 = vsyncadd [#allocation7], %s244
          %s246 = sshll.u32 [#allocation8], 4
          %s247 = int_to_ptr.vmem [resolvable:$true] %s246
          %252 = dma.hbm_to_vmem [thread:$0]  %s2, 2048, %s247, [#allocation7], 128, 128, 8
        $region16: #{tpu_custom_call.1} parent=11 // pred_fallthru
          _
        // Predicated region
        $region17: #{tpu_custom_call.1} parent=11 // pred_check
          %p253 = pneg %p131
        $region18: #{tpu_custom_call.1} parent=11 // pred_check_branch
          %255 = sbr.rel (%p253) target = $region20
        $region19: #{tpu_custom_call.1} parent=11 // pred_region
          %s257 = ssub.s32 2048, 2048
          %258 = vsyncadd [#allocation10], %s257
          %s259 = sshll.u32 [#allocation9], 4
          %s260 = int_to_ptr.vmem [resolvable:$true] %s259
          %265 = dma.hbm_to_vmem [thread:$0]  %s3, 2048, %s260, [#allocation10], 128, 128, 8
        $region20: #{tpu_custom_call.1} parent=11 // pred_fallthru
          _
        // Predicated region
        $region21: #{tpu_custom_call.1} parent=11 // pred_check
          %p266 = pneg %p152
        $region22: #{tpu_custom_call.1} parent=11 // pred_check_branch
          %268 = sbr.rel (%p266) target = $region24
        $region23: #{tpu_custom_call.1} parent=11 // pred_region
          _
        $region24: #{tpu_custom_call.1} parent=11 // pred_fallthru
          _
        // Predicated region
        $region25: #{tpu_custom_call.1} parent=11 // pred_check
          %p269 = pneg %p173
        $region26: #{tpu_custom_call.1} parent=11 // pred_check_branch
          %271 = sbr.rel (%p269) target = $region28
        $region27: #{tpu_custom_call.1} parent=11 // pred_region
          _
        $region28: #{tpu_custom_call.1} parent=11 // pred_fallthru
          _
      $region12: #{tpu_custom_call.1} parent=5 // pred_fallthru
        _
      %p272 = scmp.lt.s32.totalorder %s23, 2
      // Predicated region
      $region29: #{tpu_custom_call.1} parent=5 // pred_check
        %p273 = pneg %p272
      $region30: #{tpu_custom_call.1} parent=5 // pred_check_branch
        %275 = sbr.rel (%p273) target = $region32
      $region31: #{tpu_custom_call.1} parent=5 // pred_region
        // Predicated region
        $region33: #{tpu_custom_call.1} parent=31 // pred_check
          %p276 = pneg %p57
        $region34: #{tpu_custom_call.1} parent=31 // pred_check_branch
          %278 = sbr.rel (%p276) target = $region36
        $region35: #{tpu_custom_call.1} parent=31 // pred_region
          %s279 = sand.u32 %s47, 1
          %s280 = scalar_lea.sflag [#allocation4], %s279
          %s281 = sand.u32 %s47, 1
          %s282 = smul.addr %s281, 32
          %s283 = scalar_lea.vmem [#allocation3], %s282
          %s284 = smul.u32 2, %s30
          %s285 = smul.u32 4, %s31
          %s287 = ssub.s32 512, 512
          %288 = vsyncadd %s280, %s287
          %s289 = smul.addr %s284, 8
          %s290 = sadd.s32 %s285, %s289
          %s291 = smul.addr %s290, 64
          %s292 = scalar_lea.hbm %s0, %s291
          %s293 = sshll.u32 %s283, 4
          %s294 = int_to_ptr.vmem [resolvable:$true] %s293
          %299 = dma.hbm_to_vmem [thread:$0]  %s292, 512, %s294, %s280, 512, 256, 16
        $region36: #{tpu_custom_call.1} parent=31 // pred_fallthru
          _
        // Predicated region
        $region37: #{tpu_custom_call.1} parent=31 // pred_check
          %p300 = pneg %p83
        $region38: #{tpu_custom_call.1} parent=31 // pred_check_branch
          %302 = sbr.rel (%p300) target = $region40
        $region39: #{tpu_custom_call.1} parent=31 // pred_region
          %s303 = sand.u32 %s23, 1
          %s304 = scalar_lea.sflag [#allocation7], %s303
          %s305 = sand.u32 %s73, 1
          %s306 = smul.addr %s305, 256
          %s307 = scalar_lea.vmem [#allocation6], %s306
          %s308 = smul.u32 64, %s31
          %s310 = ssub.s32 4096, 4096
          %311 = vsyncadd %s304, %s310
          %s312 = smul.addr %s308, 64
          %s313 = scalar_lea.hbm %s1, %s312
          %s314 = sshll.u32 %s307, 4
          %s315 = int_to_ptr.vmem [resolvable:$true] %s314
          %320 = dma.hbm_to_vmem [thread:$0]  %s313, 4096, %s315, %s304, 64, 64, 4
        $region40: #{tpu_custom_call.1} parent=31 // pred_fallthru
          _
      $region32: #{tpu_custom_call.1} parent=5 // pred_fallthru
        _
      %p321 = scmp.le.s32.totalorder 1, %s23
      %p322 = scmp.lt.s32.totalorder %s23, 3
      %p323 = pnand %p321, %p322
      %p324 = pneg %p323
      // Predicated region
      $region41: #{tpu_custom_call.1} parent=5 // pred_check
        _
      $region42: #{tpu_custom_call.1} parent=5 // pred_check_branch
        %326 = sbr.rel (%p323) target = $region44
      $region43: #{tpu_custom_call.1} parent=5 // pred_region
        %s327 = ssub.s32 %s23, 1
        %s328 = sand.u32 %s50, 1
        %s329 = scalar_lea.sflag [#allocation4], %s328
        %s330 = sand.u32 %s50, 1
        %s331 = smul.addr %s330, 32
        %s332 = scalar_lea.vmem [#allocation3], %s331
        // Predicated region
        $region45: #{tpu_custom_call.1} parent=43 // pred_check
          %p333 = pneg %p63
        $region46: #{tpu_custom_call.1} parent=43 // pred_check_branch
          %335 = sbr.rel (%p333) target = $region48
        $region47: #{tpu_custom_call.1} parent=43 // pred_region
          %336 = dma.done %s329, 512
        $region48: #{tpu_custom_call.1} parent=43 // pred_fallthru
          _
        %s337 = sand.u32 %s28, 1
        %s338 = scalar_lea.sflag [#allocation7], %s337
        %s339 = sand.u32 %s76, 1
        %s340 = smul.addr %s339, 256
        %s341 = scalar_lea.vmem [#allocation6], %s340
        // Predicated region
        $region49: #{tpu_custom_call.1} parent=43 // pred_check
          %p342 = pneg %p89
        $region50: #{tpu_custom_call.1} parent=43 // pred_check_branch
          %344 = sbr.rel (%p342) target = $region52
        $region51: #{tpu_custom_call.1} parent=43 // pred_region
          %345 = dma.done %s338, 4096
        $region52: #{tpu_custom_call.1} parent=43 // pred_fallthru
          _
        // Predicated region
        $region53: #{tpu_custom_call.1} parent=43 // pred_check
          %p346 = pneg %p110
        $region54: #{tpu_custom_call.1} parent=43 // pred_check_branch
          %348 = sbr.rel (%p346) target = $region56
        $region55: #{tpu_custom_call.1} parent=43 // pred_region
          %349 = dma.done [#allocation7], 2048
        $region56: #{tpu_custom_call.1} parent=43 // pred_fallthru
          _
        // Predicated region
        $region57: #{tpu_custom_call.1} parent=43 // pred_check
          %p350 = pneg %p131
        $region58: #{tpu_custom_call.1} parent=43 // pred_check_branch
          %352 = sbr.rel (%p350) target = $region60
        $region59: #{tpu_custom_call.1} parent=43 // pred_region
          %353 = dma.done [#allocation10], 2048
        $region60: #{tpu_custom_call.1} parent=43 // pred_fallthru
          _
        %s354 = sand.u32 %s50, 1
        %s355 = scalar_lea.sflag [#allocation4], %s354
        %s356 = sand.u32 %s50, 1
        %s357 = smul.addr %s356, 32
        %s358 = scalar_lea.vmem [#allocation3], %s357
        %p359 = pneg %p63
        %p360 = pneg %p60
        %s361 = sand.u32 %s28, 1
        %s362 = scalar_lea.sflag [#allocation7], %s361
        %s363 = sand.u32 %s76, 1
        %s364 = smul.addr %s363, 256
        %s365 = scalar_lea.vmem [#allocation6], %s364
        %p366 = pneg %p89
        %p367 = pneg %p86
        %p368 = pneg %p110
        %p369 = pneg %p107
        %p370 = pneg %p131
        %p371 = pneg %p128
        %p372 = pneg %p152
        %p373 = pneg %p149
        %p374 = pneg %p173
        %p375 = pneg %p170
        %p376 = pneg %p199
        %p377 = pneg %p196
        %p378 = pneg %p225
        %p379 = pneg %p222
        %s380 = smul.u32 2, %s32
        %s381 = smul.u32 4, %s33
        %s382 = smul.u32 64, %s33
        %s383 = smul.u32 2, %s32
        %s384 = smul.u32 2, %s32
        %p386 = scmp.eq.s32.totalorder %s33, 0
        // Predicated region
        $region61: #{tpu_custom_call.1} parent=43 // pred_check
          %p387 = pneg %p386
        $region62: #{tpu_custom_call.1} parent=43 // pred_check_branch
          %389 = sbr.rel (%p387) target = $region64
        $region63: #{tpu_custom_call.1} parent=43 // pred_region
          %390 = vst [vmem:[#allocation2] sm:$0xff] 0.0
          %391 = vst [vmem:[#allocation2 + $0x8] sm:$0xff] 0.0
        $region64: #{tpu_custom_call.1} parent=43 // pred_fallthru
          _
        %v392 = vld [vmem:[#allocation2] sm:$0xff]
        %v393 = vld [vmem:[#allocation2 + $0x8] sm:$0xff]
        %v394 = vld [vmem:[%s332] sm:$0xff]
        %v395 = vld [vmem:[%s332 + $0x8] sm:$0xff]
        %v396 = vld [vmem:[%s332 + $0x10] sm:$0xff]
        %v397 = vld [vmem:[%s332 + $0x18] sm:$0xff]
        %v398 = vld [vmem:[%s341] sm:$0xf]
        %v399 = vld [vmem:[%s341 + $0x4] sm:$0xf]
        %v400 = vld [vmem:[%s341 + $0x8] sm:$0xf]
        %v401 = vld [vmem:[%s341 + $0xc] sm:$0xf]
        %v402 = vld [vmem:[%s341 + $0x10] sm:$0xf]
        %v403 = vld [vmem:[%s341 + $0x14] sm:$0xf]
        %v404 = vld [vmem:[%s341 + $0x18] sm:$0xf]
        %v405 = vld [vmem:[%s341 + $0x1c] sm:$0xf]
        %v406 = vld [vmem:[%s341 + $0x20] sm:$0xf]
        %v407 = vld [vmem:[%s341 + $0x24] sm:$0xf]
        %v408 = vld [vmem:[%s341 + $0x28] sm:$0xf]
        %v409 = vld [vmem:[%s341 + $0x2c] sm:$0xf]
        %v410 = vld [vmem:[%s341 + $0x30] sm:$0xf]
        %v411 = vld [vmem:[%s341 + $0x34] sm:$0xf]
        %v412 = vld [vmem:[%s341 + $0x38] sm:$0xf]
        %v413 = vld [vmem:[%s341 + $0x3c] sm:$0xf]
        %v414 = vld [vmem:[%s341 + $0x40] sm:$0xf]
        %v415 = vld [vmem:[%s341 + $0x44] sm:$0xf]
        %v416 = vld [vmem:[%s341 + $0x48] sm:$0xf]
        %v417 = vld [vmem:[%s341 + $0x4c] sm:$0xf]
        %v418 = vld [vmem:[%s341 + $0x50] sm:$0xf]
        %v419 = vld [vmem:[%s341 + $0x54] sm:$0xf]
        %v420 = vld [vmem:[%s341 + $0x58] sm:$0xf]
        %v421 = vld [vmem:[%s341 + $0x5c] sm:$0xf]
        %v422 = vld [vmem:[%s341 + $0x60] sm:$0xf]
        %v423 = vld [vmem:[%s341 + $0x64] sm:$0xf]
        %v424 = vld [vmem:[%s341 + $0x68] sm:$0xf]
        %v425 = vld [vmem:[%s341 + $0x6c] sm:$0xf]
        %v426 = vld [vmem:[%s341 + $0x70] sm:$0xf]
        %v427 = vld [vmem:[%s341 + $0x74] sm:$0xf]
        %v428 = vld [vmem:[%s341 + $0x78] sm:$0xf]
        %v429 = vld [vmem:[%s341 + $0x7c] sm:$0xf]
        %v430 = vld [vmem:[%s341 + $0x80] sm:$0xf]
        %v431 = vld [vmem:[%s341 + $0x84] sm:$0xf]
        %v432 = vld [vmem:[%s341 + $0x88] sm:$0xf]
        %v433 = vld [vmem:[%s341 + $0x8c] sm:$0xf]
        %v434 = vld [vmem:[%s341 + $0x90] sm:$0xf]
        %v435 = vld [vmem:[%s341 + $0x94] sm:$0xf]
        %v436 = vld [vmem:[%s341 + $0x98] sm:$0xf]
        %v437 = vld [vmem:[%s341 + $0x9c] sm:$0xf]
        %v438 = vld [vmem:[%s341 + $0xa0] sm:$0xf]
        %v439 = vld [vmem:[%s341 + $0xa4] sm:$0xf]
        %v440 = vld [vmem:[%s341 + $0xa8] sm:$0xf]
        %v441 = vld [vmem:[%s341 + $0xac] sm:$0xf]
        %v442 = vld [vmem:[%s341 + $0xb0] sm:$0xf]
        %v443 = vld [vmem:[%s341 + $0xb4] sm:$0xf]
        %v444 = vld [vmem:[%s341 + $0xb8] sm:$0xf]
        %v445 = vld [vmem:[%s341 + $0xbc] sm:$0xf]
        %v446 = vld [vmem:[%s341 + $0xc0] sm:$0xf]
        %v447 = vld [vmem:[%s341 + $0xc4] sm:$0xf]
        %v448 = vld [vmem:[%s341 + $0xc8] sm:$0xf]
        %v449 = vld [vmem:[%s341 + $0xcc] sm:$0xf]
        %v450 = vld [vmem:[%s341 + $0xd0] sm:$0xf]
        %v451 = vld [vmem:[%s341 + $0xd4] sm:$0xf]
        %v452 = vld [vmem:[%s341 + $0xd8] sm:$0xf]
        %v453 = vld [vmem:[%s341 + $0xdc] sm:$0xf]
        %v454 = vld [vmem:[%s341 + $0xe0] sm:$0xf]
        %v455 = vld [vmem:[%s341 + $0xe4] sm:$0xf]
        %v456 = vld [vmem:[%s341 + $0xe8] sm:$0xf]
        %v457 = vld [vmem:[%s341 + $0xec] sm:$0xf]
        %v458 = vld [vmem:[%s341 + $0xf0] sm:$0xf]
        %v459 = vld [vmem:[%s341 + $0xf4] sm:$0xf]
        %v460 = vld [vmem:[%s341 + $0xf8] sm:$0xf]
        %v461 = vld [vmem:[%s341 + $0xfc] sm:$0xf]
        %v466 = vunpack.c.l.b16 %v394
        %v467 = vunpack.c.h.b16 %v394
        %v468 = vunpack.c.l.b16 %v395
        %v469 = vunpack.c.h.b16 %v395
        %v470 = vunpack.c.l.b16 %v396
        %v471 = vunpack.c.h.b16 %v396
        %v472 = vunpack.c.l.b16 %v397
        %v473 = vunpack.c.h.b16 %v397
        %v474 = vpack.c.b16 %v470, %v466
        %v475 = vpack.c.b16 %v471, %v467
        %v476 = vpack.c.b16 %v472, %v468
        %v477 = vpack.c.b16 %v473, %v469
        %v546 = vunpack.c.l.b16 %v398
        %v547 = vunpack.c.l.b16 %v399
        %v548 = vunpack.c.l.b16 %v400
        %v549 = vunpack.c.l.b16 %v401
        %v550 = vunpack.c.l.b16 %v402
        %v551 = vunpack.c.l.b16 %v403
        %v552 = vunpack.c.l.b16 %v404
        %v553 = vunpack.c.l.b16 %v405
        %v554 = vunpack.c.l.b16 %v406
        %v555 = vunpack.c.l.b16 %v407
        %v556 = vunpack.c.l.b16 %v408
        %v557 = vunpack.c.l.b16 %v409
        %v558 = vunpack.c.l.b16 %v410
        %v559 = vunpack.c.l.b16 %v411
        %v560 = vunpack.c.l.b16 %v412
        %v561 = vunpack.c.l.b16 %v413
        %v562 = vunpack.c.l.b16 %v414
        %v563 = vunpack.c.l.b16 %v415
        %v564 = vunpack.c.l.b16 %v416
        %v565 = vunpack.c.l.b16 %v417
        %v566 = vunpack.c.l.b16 %v418
        %v567 = vunpack.c.l.b16 %v419
        %v568 = vunpack.c.l.b16 %v420
        %v569 = vunpack.c.l.b16 %v421
        %v570 = vunpack.c.l.b16 %v422
        %v571 = vunpack.c.l.b16 %v423
        %v572 = vunpack.c.l.b16 %v424
        %v573 = vunpack.c.l.b16 %v425
        %v574 = vunpack.c.l.b16 %v426
        %v575 = vunpack.c.l.b16 %v427
        %v576 = vunpack.c.l.b16 %v428
        %v577 = vunpack.c.l.b16 %v429
        %v578 = vunpack.c.l.b16 %v430
        %v579 = vunpack.c.l.b16 %v431
        %v580 = vunpack.c.l.b16 %v432
        %v581 = vunpack.c.l.b16 %v433
        %v582 = vunpack.c.l.b16 %v434
        %v583 = vunpack.c.l.b16 %v435
        %v584 = vunpack.c.l.b16 %v436
        %v585 = vunpack.c.l.b16 %v437
        %v586 = vunpack.c.l.b16 %v438
        %v587 = vunpack.c.l.b16 %v439
        %v588 = vunpack.c.l.b16 %v440
        %v589 = vunpack.c.l.b16 %v441
        %v590 = vunpack.c.l.b16 %v442
        %v591 = vunpack.c.l.b16 %v443
        %v592 = vunpack.c.l.b16 %v444
        %v593 = vunpack.c.l.b16 %v445
        %v594 = vunpack.c.l.b16 %v446
        %v595 = vunpack.c.l.b16 %v447
        %v596 = vunpack.c.l.b16 %v448
        %v597 = vunpack.c.l.b16 %v449
        %v598 = vunpack.c.l.b16 %v450
        %v599 = vunpack.c.l.b16 %v451
        %v600 = vunpack.c.l.b16 %v452
        %v601 = vunpack.c.l.b16 %v453
        %v602 = vunpack.c.l.b16 %v454
        %v603 = vunpack.c.l.b16 %v455
        %v604 = vunpack.c.l.b16 %v456
        %v605 = vunpack.c.l.b16 %v457
        %v606 = vunpack.c.l.b16 %v458
        %v607 = vunpack.c.l.b16 %v459
        %v608 = vunpack.c.l.b16 %v460
        %v609 = vunpack.c.l.b16 %v461
        %v610 = vpack.c.b16 %v547, %v546
        %v611 = vpack.c.b16 %v549, %v548
        %v612 = vpack.c.b16 %v551, %v550
        %v613 = vpack.c.b16 %v553, %v552
        %v614 = vpack.c.b16 %v555, %v554
        %v615 = vpack.c.b16 %v557, %v556
        %v616 = vpack.c.b16 %v559, %v558
        %v617 = vpack.c.b16 %v561, %v560
        %v618 = vpack.c.b16 %v563, %v562
        %v619 = vpack.c.b16 %v565, %v564
        %v620 = vpack.c.b16 %v567, %v566
        %v621 = vpack.c.b16 %v569, %v568
        %v622 = vpack.c.b16 %v571, %v570
        %v623 = vpack.c.b16 %v573, %v572
        %v624 = vpack.c.b16 %v575, %v574
        %v625 = vpack.c.b16 %v577, %v576
        %v626 = vpack.c.b16 %v579, %v578
        %v627 = vpack.c.b16 %v581, %v580
        %v628 = vpack.c.b16 %v583, %v582
        %v629 = vpack.c.b16 %v585, %v584
        %v630 = vpack.c.b16 %v587, %v586
        %v631 = vpack.c.b16 %v589, %v588
        %v632 = vpack.c.b16 %v591, %v590
        %v633 = vpack.c.b16 %v593, %v592
        %v634 = vpack.c.b16 %v595, %v594
        %v635 = vpack.c.b16 %v597, %v596
        %v636 = vpack.c.b16 %v599, %v598
        %v637 = vpack.c.b16 %v601, %v600
        %v638 = vpack.c.b16 %v603, %v602
        %v639 = vpack.c.b16 %v605, %v604
        %v640 = vpack.c.b16 %v607, %v606
        %v641 = vpack.c.b16 %v609, %v608
        %674 = vmatprep.subr.bf16.mxu0 0
        %675 = vmatpush1.bf16.msra.mxu0 %v617
        %676 = vmatprep.subr.bf16.mxu0 0
        %677 = vmatpush1.bf16.msra.mxu0 %v616
        %678 = vmatprep.subr.bf16.mxu0 0
        %679 = vmatpush1.bf16.msra.mxu0 %v615
        %680 = vmatprep.subr.bf16.mxu0 0
        %681 = vmatpush1.bf16.msra.mxu0 %v614
        %682 = vmatprep.subr.bf16.mxu0 0
        %683 = vmatpush1.bf16.msra.mxu0 %v613
        %684 = vmatprep.subr.bf16.mxu0 0
        %685 = vmatpush1.bf16.msra.mxu0 %v612
        %686 = vmatprep.subr.bf16.mxu0 0
        %687 = vmatpush1.bf16.msra.mxu0 %v611
        %688 = vmatprep.subr.bf16.mxu0 0
        %689 = vmatpush1.bf16.msra.mxu0 %v610
        %690 = vmatprep.subr.bf16.mxu0 0
        %691 = vmatpush2.bf16.msra.mxu0 %v625
        %692 = vmatprep.subr.bf16.mxu0 0
        %693 = vmatpush2.bf16.msra.mxu0 %v624
        %694 = vmatprep.subr.bf16.mxu0 0
        %695 = vmatpush2.bf16.msra.mxu0 %v623
        %696 = vmatprep.subr.bf16.mxu0 0
        %697 = vmatpush2.bf16.msra.mxu0 %v622
        %698 = vmatprep.subr.bf16.mxu0 0
        %699 = vmatpush2.bf16.msra.mxu0 %v621
        %700 = vmatprep.subr.bf16.mxu0 0
        %701 = vmatpush2.bf16.msra.mxu0 %v620
        %702 = vmatprep.subr.bf16.mxu0 0
        %703 = vmatpush2.bf16.msra.mxu0 %v619
        %704 = vmatprep.subr.bf16.mxu0 0
        %705 = vmatpush2.bf16.msra.mxu0 %v618
        %706 = vmatprep.mubr.bf16.mxu0 %v475
        %707 = vmatmul.mubr.bf16.gmra.mxu0 %v474
        %v708 = vpop.f32.mrf.mxu0
        %v709 = vadd.f32 0.0, %v708
        %v710 = vpop.f32.mrf.mxu0
        %v711 = vpop.f32.mrf.mxu0
        %v712 = vadd.f32 0.0, %v711
        %v713 = vpop.f32.mrf.mxu0
        %714 = vdwg.mxu0
        %715 = vmatprep.subr.bf16.mxu0 0
        %716 = vmatpush1.bf16.msra.mxu0 %v633
        %717 = vmatprep.subr.bf16.mxu0 0
        %718 = vmatpush1.bf16.msra.mxu0 %v632
        %719 = vmatprep.subr.bf16.mxu0 0
        %720 = vmatpush1.bf16.msra.mxu0 %v631
        %721 = vmatprep.subr.bf16.mxu0 0
        %722 = vmatpush1.bf16.msra.mxu0 %v630
        %723 = vmatprep.subr.bf16.mxu0 0
        %724 = vmatpush1.bf16.msra.mxu0 %v629
        %725 = vmatprep.subr.bf16.mxu0 0
        %726 = vmatpush1.bf16.msra.mxu0 %v628
        %727 = vmatprep.subr.bf16.mxu0 0
        %728 = vmatpush1.bf16.msra.mxu0 %v627
        %729 = vmatprep.subr.bf16.mxu0 0
        %730 = vmatpush1.bf16.msra.mxu0 %v626
        %731 = vmatprep.subr.bf16.mxu0 0
        %732 = vmatpush2.bf16.msra.mxu0 %v641
        %733 = vmatprep.subr.bf16.mxu0 0
        %734 = vmatpush2.bf16.msra.mxu0 %v640
        %735 = vmatprep.subr.bf16.mxu0 0
        %736 = vmatpush2.bf16.msra.mxu0 %v639
        %737 = vmatprep.subr.bf16.mxu0 0
        %738 = vmatpush2.bf16.msra.mxu0 %v638
        %739 = vmatprep.subr.bf16.mxu0 0
        %740 = vmatpush2.bf16.msra.mxu0 %v637
        %741 = vmatprep.subr.bf16.mxu0 0
        %742 = vmatpush2.bf16.msra.mxu0 %v636
        %743 = vmatprep.subr.bf16.mxu0 0
        %744 = vmatpush2.bf16.msra.mxu0 %v635
        %745 = vmatprep.subr.bf16.mxu0 0
        %746 = vmatpush2.bf16.msra.mxu0 %v634
        %747 = vmatprep.mubr.bf16.mxu0 %v477
        %748 = vmatmul.mubr.bf16.gmra.mxu0 %v476
        %v749 = vpop.f32.mrf.mxu0
        %v750 = vadd.f32 %v709, %v749
        %v751 = vpop.f32.mrf.mxu0
        %v752 = vpop.f32.mrf.mxu0
        %v753 = vadd.f32 %v712, %v752
        %v754 = vpop.f32.mrf.mxu0
        %755 = vdwg.mxu0
        %v756 = vadd.f32 %v392, %v750
        %v757 = vadd.f32 %v393, %v753
        %758 = vst [vmem:[#allocation2] sm:$0xff] %v756
        %759 = vst [vmem:[#allocation2 + $0x8] sm:$0xff] %v757
        %p760 = scmp.eq.s32.totalorder %s33, 1
        // Predicated region
        $region65: #{tpu_custom_call.1} parent=43 // pred_check
          %p761 = pneg %p760
        $region66: #{tpu_custom_call.1} parent=43 // pred_check_branch
          %763 = sbr.rel (%p761) target = $region68
        $region67: #{tpu_custom_call.1} parent=43 // pred_region
          %v764 = vld [vmem:[#allocation2] sm:$0xff]
          %v765 = vld [vmem:[#allocation2 + $0x8] sm:$0xff]
          %v766 = vld [vmem:[#allocation8] sm:$0xff]
          %v767 = vld [vmem:[#allocation8 + $0x8] sm:$0xff]
          %v768 = vld [vmem:[#allocation8 + $0x10] sm:$0xff]
          %v769 = vld [vmem:[#allocation8 + $0x18] sm:$0xff]
          %v770 = vld [vmem:[#allocation8 + $0x20] sm:$0xff]
          %v771 = vld [vmem:[#allocation8 + $0x28] sm:$0xff]
          %v772 = vld [vmem:[#allocation8 + $0x30] sm:$0xff]
          %v773 = vld [vmem:[#allocation8 + $0x38] sm:$0xff]
          %v774 = vld [vmem:[#allocation8 + $0x40] sm:$0xff]
          %v775 = vld [vmem:[#allocation8 + $0x48] sm:$0xff]
          %v776 = vld [vmem:[#allocation8 + $0x50] sm:$0xff]
          %v777 = vld [vmem:[#allocation8 + $0x58] sm:$0xff]
          %v778 = vld [vmem:[#allocation8 + $0x60] sm:$0xff]
          %v779 = vld [vmem:[#allocation8 + $0x68] sm:$0xff]
          %v780 = vld [vmem:[#allocation8 + $0x70] sm:$0xff]
          %v781 = vld [vmem:[#allocation8 + $0x78] sm:$0xff]
          %v782 = vld [vmem:[%s5] sm:$0x1]
          %v784 = vlaneseq
          %v785 = vshrl.u32 %v784, 7
          %v786 = vsub.s32 0, %v785
          %v787 = vrot.slane %v782, %v786
          %789 = vmatprep.subr.mxu0 0.0
          %790 = vmatpush1.msra.mxu0 %v781
          %791 = vmatprep.subr.mxu0 0.0
          %792 = vmatpush1.msra.mxu0 %v780
          %793 = vmatprep.subr.mxu0 0.0
          %794 = vmatpush1.msra.mxu0 %v779
          %795 = vmatprep.subr.mxu0 0.0
          %796 = vmatpush1.msra.mxu0 %v778
          %797 = vmatprep.subr.mxu0 0.0
          %798 = vmatpush1.msra.mxu0 %v777
          %799 = vmatprep.subr.mxu0 0.0
          %800 = vmatpush1.msra.mxu0 %v776
          %801 = vmatprep.subr.mxu0 0.0
          %802 = vmatpush1.msra.mxu0 %v775
          %803 = vmatprep.subr.mxu0 0.0
          %804 = vmatpush1.msra.mxu0 %v774
          %805 = vmatprep.subr.mxu0 0.0
          %806 = vmatpush1.msra.mxu0 %v773
          %807 = vmatprep.subr.mxu0 0.0
          %808 = vmatpush1.msra.mxu0 %v772
          %809 = vmatprep.subr.mxu0 0.0
          %810 = vmatpush1.msra.mxu0 %v771
          %811 = vmatprep.subr.mxu0 0.0
          %812 = vmatpush1.msra.mxu0 %v770
          %813 = vmatprep.subr.mxu0 0.0
          %814 = vmatpush1.msra.mxu0 %v769
          %815 = vmatprep.subr.mxu0 0.0
          %816 = vmatpush1.msra.mxu0 %v768
          %817 = vmatprep.subr.mxu0 0.0
          %818 = vmatpush1.msra.mxu0 %v767
          %819 = vmatprep.subr.mxu0 0.0
          %820 = vmatpush1.msra.mxu0 %v766
          %821 = vmatprep.subr.mxu0 0.0
          %822 = vmatpush2.msra.mxu0 0.0
          %823 = vmatprep.subr.mxu0 0.0
          %824 = vmatpush2.msra.mxu0 0.0
          %825 = vmatprep.subr.mxu0 0.0
          %826 = vmatpush2.msra.mxu0 0.0
          %827 = vmatprep.subr.mxu0 0.0
          %828 = vmatpush2.msra.mxu0 0.0
          %829 = vmatprep.subr.mxu0 0.0
          %830 = vmatpush2.msra.mxu0 0.0
          %831 = vmatprep.subr.mxu0 0.0
          %832 = vmatpush2.msra.mxu0 0.0
          %833 = vmatprep.subr.mxu0 0.0
          %834 = vmatpush2.msra.mxu0 0.0
          %835 = vmatprep.subr.mxu0 0.0
          %836 = vmatpush2.msra.mxu0 0.0
          %837 = vmatprep.subr.mxu0 0.0
          %838 = vmatpush2.msra.mxu0 0.0
          %839 = vmatprep.subr.mxu0 0.0
          %840 = vmatpush2.msra.mxu0 0.0
          %841 = vmatprep.subr.mxu0 0.0
          %842 = vmatpush2.msra.mxu0 0.0
          %843 = vmatprep.subr.mxu0 0.0
          %844 = vmatpush2.msra.mxu0 0.0
          %845 = vmatprep.subr.mxu0 0.0
          %846 = vmatpush2.msra.mxu0 0.0
          %847 = vmatprep.subr.mxu0 0.0
          %848 = vmatpush2.msra.mxu0 0.0
          %849 = vmatprep.subr.mxu0 0.0
          %850 = vmatpush2.msra.mxu0 0.0
          %851 = vmatprep.subr.mxu0 0.0
          %852 = vmatpush2.msra.mxu0 0.0
          %853 = vmatprep.mubr.f32.mxu0 0.0
          %854 = vmatmul.mubr.f32.gmra.mxu0 %v764
          %v855 = vpop.f32.mrf.mxu0
          %v856 = vadd.f32 %v787, %v855
          %v857 = vpop.f32.mrf.mxu0
          %858 = vmatprep.mubr.f32.mxu0 0.0
          %859 = vmatmul.mubr.f32.gmra.mxu0 %v765
          %v860 = vpop.f32.mrf.mxu0
          %v861 = vadd.f32 %v787, %v860
          %v862 = vpop.f32.mrf.mxu0
          %863 = vdwg.mxu0
          %v864 = vld [vmem:[#allocation9] sm:$0xff]
          %v865 = vld [vmem:[#allocation9 + $0x8] sm:$0xff]
          %v866 = vld [vmem:[#allocation9 + $0x10] sm:$0xff]
          %v867 = vld [vmem:[#allocation9 + $0x18] sm:$0xff]
          %v868 = vld [vmem:[#allocation9 + $0x20] sm:$0xff]
          %v869 = vld [vmem:[#allocation9 + $0x28] sm:$0xff]
          %v870 = vld [vmem:[#allocation9 + $0x30] sm:$0xff]
          %v871 = vld [vmem:[#allocation9 + $0x38] sm:$0xff]
          %v872 = vld [vmem:[#allocation9 + $0x40] sm:$0xff]
          %v873 = vld [vmem:[#allocation9 + $0x48] sm:$0xff]
          %v874 = vld [vmem:[#allocation9 + $0x50] sm:$0xff]
          %v875 = vld [vmem:[#allocation9 + $0x58] sm:$0xff]
          %v876 = vld [vmem:[#allocation9 + $0x60] sm:$0xff]
          %v877 = vld [vmem:[#allocation9 + $0x68] sm:$0xff]
          %v878 = vld [vmem:[#allocation9 + $0x70] sm:$0xff]
          %v879 = vld [vmem:[#allocation9 + $0x78] sm:$0xff]
          %v880 = vld [vmem:[%s4] sm:$0x1]
          %v882 = vlaneseq
          %v883 = vshrl.u32 %v882, 7
          %v884 = vsub.s32 0, %v883
          %v885 = vrot.slane %v880, %v884
          %887 = vmatprep.subr.mxu0 0.0
          %888 = vmatpush1.msra.mxu0 %v879
          %889 = vmatprep.subr.mxu0 0.0
          %890 = vmatpush1.msra.mxu0 %v878
          %891 = vmatprep.subr.mxu0 0.0
          %892 = vmatpush1.msra.mxu0 %v877
          %893 = vmatprep.subr.mxu0 0.0
          %894 = vmatpush1.msra.mxu0 %v876
          %895 = vmatprep.subr.mxu0 0.0
          %896 = vmatpush1.msra.mxu0 %v875
          %897 = vmatprep.subr.mxu0 0.0
          %898 = vmatpush1.msra.mxu0 %v874
          %899 = vmatprep.subr.mxu0 0.0
          %900 = vmatpush1.msra.mxu0 %v873
          %901 = vmatprep.subr.mxu0 0.0
          %902 = vmatpush1.msra.mxu0 %v872
          %903 = vmatprep.subr.mxu0 0.0
          %904 = vmatpush1.msra.mxu0 %v871
          %905 = vmatprep.subr.mxu0 0.0
          %906 = vmatpush1.msra.mxu0 %v870
          %907 = vmatprep.subr.mxu0 0.0
          %908 = vmatpush1.msra.mxu0 %v869
          %909 = vmatprep.subr.mxu0 0.0
          %910 = vmatpush1.msra.mxu0 %v868
          %911 = vmatprep.subr.mxu0 0.0
          %912 = vmatpush1.msra.mxu0 %v867
          %913 = vmatprep.subr.mxu0 0.0
          %914 = vmatpush1.msra.mxu0 %v866
          %915 = vmatprep.subr.mxu0 0.0
          %916 = vmatpush1.msra.mxu0 %v865
          %917 = vmatprep.subr.mxu0 0.0
          %918 = vmatpush1.msra.mxu0 %v864
          %919 = vmatprep.subr.mxu0 0.0
          %920 = vmatpush2.msra.mxu0 0.0
          %921 = vmatprep.subr.mxu0 0.0
          %922 = vmatpush2.msra.mxu0 0.0
          %923 = vmatprep.subr.mxu0 0.0
          %924 = vmatpush2.msra.mxu0 0.0
          %925 = vmatprep.subr.mxu0 0.0
          %926 = vmatpush2.msra.mxu0 0.0
          %927 = vmatprep.subr.mxu0 0.0
          %928 = vmatpush2.msra.mxu0 0.0
          %929 = vmatprep.subr.mxu0 0.0
          %930 = vmatpush2.msra.mxu0 0.0
          %931 = vmatprep.subr.mxu0 0.0
          %932 = vmatpush2.msra.mxu0 0.0
          %933 = vmatprep.subr.mxu0 0.0
          %934 = vmatpush2.msra.mxu0 0.0
          %935 = vmatprep.subr.mxu0 0.0
          %936 = vmatpush2.msra.mxu0 0.0
          %937 = vmatprep.subr.mxu0 0.0
          %938 = vmatpush2.msra.mxu0 0.0
          %939 = vmatprep.subr.mxu0 0.0
          %940 = vmatpush2.msra.mxu0 0.0
          %941 = vmatprep.subr.mxu0 0.0
          %942 = vmatpush2.msra.mxu0 0.0
          %943 = vmatprep.subr.mxu0 0.0
          %944 = vmatpush2.msra.mxu0 0.0
          %945 = vmatprep.subr.mxu0 0.0
          %946 = vmatpush2.msra.mxu0 0.0
          %947 = vmatprep.subr.mxu0 0.0
          %948 = vmatpush2.msra.mxu0 0.0
          %949 = vmatprep.subr.mxu0 0.0
          %950 = vmatpush2.msra.mxu0 0.0
          %951 = vmatprep.mubr.f32.mxu0 0.0
          %952 = vmatmul.mubr.f32.gmra.mxu0 %v764
          %v953 = vpop.f32.mrf.mxu0
          %v954 = vadd.f32 %v885, %v953
          %v955 = vpop.f32.mrf.mxu0
          %956 = vmatprep.mubr.f32.mxu0 0.0
          %957 = vmatmul.mubr.f32.gmra.mxu0 %v765
          %v958 = vpop.f32.mrf.mxu0
          %v959 = vadd.f32 %v885, %v958
          %v960 = vpop.f32.mrf.mxu0
          %961 = vdwg.mxu0
          %v962 = vmul.f32 %v954, %v954
          %v963 = vmul.f32 %v959, %v959
          %964 = vadd.xlane.f32.xlu0 %v962
          %v965 = vpop.xlane.xlu0 %964
          %966 = vadd.xlane.f32.xlu0 %v963
          %v967 = vpop.xlane.xlu0 %966
          %v968 = vmax.f32 %v965, 1e-24
          %v969 = vmax.f32 %v967, 1e-24
          %v970 = vrsqrt.pop %v968
          %v971 = vrsqrt.pop %v969
          %v972 = vmul.f32 %v954, %v970
          %v973 = vmul.f32 %v959, %v971
          %974 = vst [vmem:[#allocation12] sm:$0xff] %v972
          %975 = vst [vmem:[#allocation12 + $0x8] sm:$0xff] %v973
          %976 = vst [vmem:[#allocation11] sm:$0xff] %v856
          %977 = vst [vmem:[#allocation11 + $0x8] sm:$0xff] %v861
        $region68: #{tpu_custom_call.1} parent=43 // pred_fallthru
          _
        // Predicated region
        $region69: #{tpu_custom_call.1} parent=43 // pred_check
          %p978 = pneg %p196
        $region70: #{tpu_custom_call.1} parent=43 // pred_check_branch
          %980 = sbr.rel (%p978) target = $region72
        $region71: #{tpu_custom_call.1} parent=43 // pred_region
          %s981 = smul.u32 2, %s32
          %s983 = ssub.s32 256, 256
          %984 = vsyncadd [#allocation5], %s983
          %s985 = smul.addr %s981, 128
          %s986 = scalar_lea.hbm %s6, %s985
          %s987 = sshll.u32 [#allocation11], 4
          %s988 = int_to_ptr.vmem [resolvable:$true] %s987
          %993 = dma.vmem_to_hbm [thread:$0]  %s988, 256, %s986, [#allocation5], 128, 128, 8
        $region72: #{tpu_custom_call.1} parent=43 // pred_fallthru
          _
        // Predicated region
        $region73: #{tpu_custom_call.1} parent=43 // pred_check
          %p994 = pneg %p222
        $region74: #{tpu_custom_call.1} parent=43 // pred_check_branch
          %996 = sbr.rel (%p994) target = $region76
        $region75: #{tpu_custom_call.1} parent=43 // pred_region
          %s997 = smul.u32 2, %s32
          %s999 = ssub.s32 256, 256
          %1000 = vsyncadd [#allocation13], %s999
          %s1001 = smul.addr %s997, 128
          %s1002 = scalar_lea.hbm %s7, %s1001
          %s1003 = sshll.u32 [#allocation12], 4
          %s1004 = int_to_ptr.vmem [resolvable:$true] %s1003
          %1009 = dma.vmem_to_hbm [thread:$0]  %s1004, 256, %s1002, [#allocation13], 128, 128, 8
        $region76: #{tpu_custom_call.1} parent=43 // pred_fallthru
          _
        // Predicated region
        $region77: #{tpu_custom_call.1} parent=43 // pred_check
          %p1010 = pneg %p196
        $region78: #{tpu_custom_call.1} parent=43 // pred_check_branch
          %1012 = sbr.rel (%p1010) target = $region80
        $region79: #{tpu_custom_call.1} parent=43 // pred_region
          %1013 = dma.done [#allocation5], 256
        $region80: #{tpu_custom_call.1} parent=43 // pred_fallthru
          _
        // Predicated region
        $region81: #{tpu_custom_call.1} parent=43 // pred_check
          %p1014 = pneg %p222
        $region82: #{tpu_custom_call.1} parent=43 // pred_check_branch
          %1016 = sbr.rel (%p1014) target = $region84
        $region83: #{tpu_custom_call.1} parent=43 // pred_region
          %1017 = dma.done [#allocation13], 256
        $region84: #{tpu_custom_call.1} parent=43 // pred_fallthru
          _
      $region44: #{tpu_custom_call.1} parent=5 // pred_fallthru
        _
      %p1018 = scmp.le.s32.totalorder 2, %s23
      // Predicated region
      $region85: #{tpu_custom_call.1} parent=5 // pred_check
        %p1019 = pneg %p1018
      $region86: #{tpu_custom_call.1} parent=5 // pred_check_branch
        %1021 = sbr.rel (%p1019) target = $region88
      $region87: #{tpu_custom_call.1} parent=5 // pred_region
        %s1022 = ssub.s32 %s23, 2
      $region88: #{tpu_custom_call.1} parent=5 // pred_fallthru
        _
    $region6: #{tpu_custom_call.1} parent=1 // loop_footer
      %s27 = sadd.s32 1, %s23
    $region7: #{tpu_custom_call.1} parent=1 // loop_footer_branch
      %22 = sbr.rel target = $region3
    $region8: #{tpu_custom_call.1} parent=1 // loop_exit
      _
    %1023 = vsyncpa [#allocation4], 1
    %s1024 = scalar_lea.sflag [#allocation4], 1
    %1025 = vsyncpa %s1024, 1
    %1026 = vsyncpa [#allocation7], 1
    %s1027 = scalar_lea.sflag [#allocation7], 1
    %1028 = vsyncpa %s1027, 1
    %1029 = vsyncpa [#allocation10], 1
    %1030 = vsyncpa [#allocation5], 1
    %s1031 = scalar_lea.sflag [#allocation5], 1
    %1032 = vsyncpa %s1031, 1
    %1033 = vsyncpa [#allocation13], 1

</llo_original>
